<compile_context>
chip_gen: v5e
topology: v5e:2x2
jax: 0.10.0
libtpu: 0.0.40
codegen_flags: <defaults>
</compile_context>

<pallas_src>
import jax
import jax.numpy as jnp
from jax.experimental import pallas as pl
from jax.experimental.pallas import tpu as pltpu

BN_EPS = 1e-5


# ---------------------------------------------------------------------------
# Fused Pallas kernel: cast -> x @ W1' (+shift1, ReLU) -> @ W2' (+shift2)
# (W1', W2' already carry the folded BN scales; shifts carry bias+BN offsets.)
# ---------------------------------------------------------------------------

def _projection_head_kernel(x_ref, w1_ref, b1_ref, w2_ref, b2_ref, o_ref):
    # In-kernel f32 -> bf16 cast of the activation tile (VPU, hidden under MXU).
    x = x_ref[...].astype(jnp.bfloat16)
    # Layer 1: Linear(+folded BN scale) with f32 MXU accumulation, shift, ReLU.
    h = jnp.dot(x, w1_ref[...], preferred_element_type=jnp.float32)
    h = jnp.maximum(h + b1_ref[...], 0.0)
    # Layer 2: Linear(+folded BN scale), shift. Intermediate stays in VMEM/vregs.
    out = jnp.dot(h.astype(jnp.bfloat16), w2_ref[...],
                  preferred_element_type=jnp.float32)
    o_ref[...] = (out + b2_ref[...]).astype(o_ref.dtype)


def _round_up(v, k):
    return ((v + k - 1) // k) * k


def projection_head(x, kp, *, block_m=1024, out_dtype=jnp.float32):
    """Fused ProjectionHead forward.

    x:  [N, input_dim] float32
    kp: kernel params from `fold_params` (bf16 folded weights, f32 shifts)
    returns [N, output_dim] in `out_dtype`.
    """
    m, d_in = x.shape
    d_hidden = kp["w1"].shape[1]
    d_out = kp["w2"].shape[1]

    # Batch-tile selection:
    #   m <= 16          -> one full-extent block (allowed by the (8,128) rule)
    #   16 < m <= 2*blk  -> split into two 16-aligned tiles (feeds both v7x TCs)
    #   otherwise        -> big block_m tiles (near HBM roofline)
    if m <= 16:
        tm = m
    elif m <= 2 * block_m:
        tm = _round_up(pl.cdiv(m, 2), 16)
    else:
        tm = block_m
    grid = (pl.cdiv(m, tm),)  # partial last block is masked by Pallas

    return pl.pallas_call(
        _projection_head_kernel,
        out_shape=jax.ShapeDtypeStruct((m, d_out), out_dtype),
        grid_spec=pltpu.PrefetchScalarGridSpec(
            num_scalar_prefetch=0,
            grid=grid,
            in_specs=[
                pl.BlockSpec((tm, d_in), lambda i: (i, 0)),          # x tile (f32)
                pl.BlockSpec((d_in, d_hidden), lambda i: (0, 0)),    # W1' (resident)
                pl.BlockSpec((1, d_hidden), lambda i: (0, 0)),       # shift1
                pl.BlockSpec((d_hidden, d_out), lambda i: (0, 0)),   # W2' (resident)
                pl.BlockSpec((1, d_out), lambda i: (0, 0)),          # shift2
            ],
            out_specs=pl.BlockSpec((tm, d_out), lambda i: (i, 0)),
        ),
        compiler_params=pltpu.CompilerParams(
            dimension_semantics=("parallel",)),
    )(x, kp["w1"], kp["shift1"], kp["w2"], kp["shift2"])


# ---------------------------------------------------------------------------
# Parameters: raw (Linear + BN) params, offline fold into kernel params
# ---------------------------------------------------------------------------

def init_raw_params(key, input_dim=512, hidden_dim=256, output_dim=128):
    def lin_bn(k, din, dout):
        kw, kb, kg, kbe, km, kv = jax.random.split(k, 6)
        return {
            "w": jax.random.normal(kw, (din, dout), jnp.float32) * jnp.sqrt(2.0 / din),
            "b": 0.05 * jax.random.normal(kb, (dout,), jnp.float32),
            "gamma": jax.random.uniform(kg, (dout,), jnp.float32, 0.5, 1.5),
            "beta": 0.1 * jax.random.normal(kbe, (dout,), jnp.float32),
            "mean": 0.1 * jax.random.normal(km, (dout,), jnp.float32),
            "var": jax.random.uniform(kv, (dout,), jnp.float32, 0.5, 1.5),
        }
    k1, k2 = jax.random.split(key)
    return {"l1": lin_bn(k1, input_dim, hidden_dim),
            "l2": lin_bn(k2, hidden_dim, output_dim)}


def fold_params(raw):
    """One-time offline transform: fold BN scale into weight columns (in f32),
    fold the Linear bias through the BN affine into the shift, then cast the
    weights to bf16 for the MXU. Shifts stay f32."""
    def fold(p):
        scale = p["gamma"] / jnp.sqrt(p["var"] + BN_EPS)
        w = p["w"] * scale[None, :]
        shift = p["beta"] + (p["b"] - p["mean"]) * scale
        return w, shift
    w1, s1 = fold(raw["l1"])
    w2, s2 = fold(raw["l2"])
    return {"w1": w1.astype(jnp.bfloat16),
            "shift1": s1.reshape(1, -1).astype(jnp.float32),
            "w2": w2.astype(jnp.bfloat16),
            "shift2": s2.reshape(1, -1).astype(jnp.float32)}


# ---------------------------------------------------------------------------
# Pure-JAX f32 reference of the ORIGINAL module (Linear -> BN -> ReLU -> Linear -> BN)
# ---------------------------------------------------------------------------

def projection_head_ref(x, raw):
    def lin_bn(z, p):
        y = z @ p["w"] + p["b"]
        return (y - p["mean"]) / jnp.sqrt(p["var"] + BN_EPS) * p["gamma"] + p["beta"]
    h = jnp.maximum(lin_bn(x, raw["l1"]), 0.0)
    return lin_bn(h, raw["l2"])


if __name__ == "__main__":
    key = jax.random.PRNGKey(0)
    pkey, xkey = jax.random.split(key)

    INPUT_DIM, HIDDEN_DIM, OUTPUT_DIM = 512, 256, 128
    BATCH = 8

    raw = init_raw_params(pkey, INPUT_DIM, HIDDEN_DIM, OUTPUT_DIM)
    kernel_params = fold_params(raw)
    x = jax.random.normal(xkey, (BATCH, INPUT_DIM), jnp.float32)

    out = projection_head(x, kernel_params)
    jax.block_until_ready(out)

    assert out.shape == (BATCH, OUTPUT_DIM), out.shape
    assert bool(jnp.all(jnp.isfinite(out)))

    ref = projection_head_ref(x, raw)
    assert bool(jnp.allclose(out, ref, rtol=5e-2, atol=5e-2)), (
        float(jnp.max(jnp.abs(out - ref))))

    print("KERNEL_OK")
</pallas_src>

<mosaic_0001>
module attributes {stable_mosaic.version = 11 : i64} {
  func.func @_projection_head_kernel(%arg0: i32, %arg1: memref<8x512xf32, #tpu.memory_space<vmem>>, %arg2: memref<512x256xbf16, #tpu.memory_space<vmem>>, %arg3: memref<1x256xf32, #tpu.memory_space<vmem>>, %arg4: memref<256x128xbf16, #tpu.memory_space<vmem>>, %arg5: memref<1x128xf32, #tpu.memory_space<vmem>>, %arg6: memref<8x128xf32, #tpu.memory_space<vmem>>) attributes {dimension_semantics = [#tpu.dimension_semantics<parallel>], iteration_bounds = array<i64: 1>, scalar_prefetch = 0 : i64, scratch_operands = 0 : i64, tpu.core_type = #tpu.core_type<tc>, window_params = [{transform_indices = @transform_0, window_bounds = array<i64: 8, 512>}, {pipeline_mode = #tpu.pipeline_mode<synchronous>, transform_indices = @transform_1, window_bounds = array<i64: 512, 256>}, {pipeline_mode = #tpu.pipeline_mode<synchronous>, transform_indices = @transform_2, window_bounds = array<i64: 1, 256>}, {pipeline_mode = #tpu.pipeline_mode<synchronous>, transform_indices = @transform_3, window_bounds = array<i64: 256, 128>}, {pipeline_mode = #tpu.pipeline_mode<synchronous>, transform_indices = @transform_4, window_bounds = array<i64: 1, 128>}, {transform_indices = @transform_5, window_bounds = array<i64: 8, 128>}]} {
    %c0 = arith.constant 0 : index
    %c0_0 = arith.constant 0 : index
    %0 = vector.load %arg1[%c0, %c0_0] : memref<8x512xf32, #tpu.memory_space<vmem>>, vector<8x512xf32>
    %1 = arith.truncf %0 : vector<8x512xf32> to vector<8x512xbf16>
    %c0_1 = arith.constant 0 : index
    %c0_2 = arith.constant 0 : index
    %2 = vector.load %arg2[%c0_1, %c0_2] : memref<512x256xbf16, #tpu.memory_space<vmem>>, vector<512x256xbf16>
    %cst = arith.constant dense<0.000000e+00> : vector<8x256xf32>
    %3 = tpu.matmul %1, %2, %cst {dimension_numbers = #tpu.dot_dimension_numbers<[1], [0], [0], [1], [0, 0, 1, 1], [], []>} : vector<8x512xbf16>, vector<512x256xbf16>, vector<8x256xf32> -> vector<8x256xf32>
    %c0_3 = arith.constant 0 : index
    %c0_4 = arith.constant 0 : index
    %4 = vector.load %arg3[%c0_3, %c0_4] : memref<1x256xf32, #tpu.memory_space<vmem>>, vector<1x256xf32>
    %5 = vector.broadcast %4 : vector<1x256xf32> to vector<8x256xf32>
    %6 = arith.addf %3, %5 : vector<8x256xf32>
    %cst_5 = arith.constant 0.000000e+00 : f32
    %7 = vector.broadcast %cst_5 : f32 to vector<8x256xf32>
    %8 = arith.maximumf %6, %7 : vector<8x256xf32>
    %9 = arith.truncf %8 : vector<8x256xf32> to vector<8x256xbf16>
    %c0_6 = arith.constant 0 : index
    %c0_7 = arith.constant 0 : index
    %10 = vector.load %arg4[%c0_6, %c0_7] : memref<256x128xbf16, #tpu.memory_space<vmem>>, vector<256x128xbf16>
    %cst_8 = arith.constant dense<0.000000e+00> : vector<8x128xf32>
    %11 = tpu.matmul %9, %10, %cst_8 {dimension_numbers = #tpu.dot_dimension_numbers<[1], [0], [0], [1], [0, 0, 1, 1], [], []>} : vector<8x256xbf16>, vector<256x128xbf16>, vector<8x128xf32> -> vector<8x128xf32>
    %c0_9 = arith.constant 0 : index
    %c0_10 = arith.constant 0 : index
    %12 = vector.load %arg5[%c0_9, %c0_10] : memref<1x128xf32, #tpu.memory_space<vmem>>, vector<1x128xf32>
    %13 = vector.broadcast %12 : vector<1x128xf32> to vector<8x128xf32>
    %14 = arith.addf %11, %13 : vector<8x128xf32>
    %c0_11 = arith.constant 0 : index
    %c0_12 = arith.constant 0 : index
    %15 = vector.load %arg6[%c0_11, %c0_12] : memref<8x128xf32, #tpu.memory_space<vmem>>, vector<8x128xf32>
    tpu.vector_store %arg6[%c0_11, %c0_12], %14 {strides = array<i32>} : memref<8x128xf32, #tpu.memory_space<vmem>>, vector<8x128xf32>,
    return
  }
  func.func @transform_0(%arg0: i32) -> (i32, i32) {
    %c0_i32 = arith.constant 0 : i32
    %c0_i32_0 = arith.constant 0 : i32
    return %arg0, %c0_i32 : i32, i32
  }
  func.func @transform_1(%arg0: i32) -> (i32, i32) {
    %c0_i32 = arith.constant 0 : i32
    %c0_i32_0 = arith.constant 0 : i32
    %c0_i32_1 = arith.constant 0 : i32
    return %c0_i32, %c0_i32_0 : i32, i32
  }
  func.func @transform_2(%arg0: i32) -> (i32, i32) {
    %c0_i32 = arith.constant 0 : i32
    %c0_i32_0 = arith.constant 0 : i32
    %c0_i32_1 = arith.constant 0 : i32
    return %c0_i32, %c0_i32_0 : i32, i32
  }
  func.func @transform_3(%arg0: i32) -> (i32, i32) {
    %c0_i32 = arith.constant 0 : i32
    %c0_i32_0 = arith.constant 0 : i32
    %c0_i32_1 = arith.constant 0 : i32
    return %c0_i32, %c0_i32_0 : i32, i32
  }
  func.func @transform_4(%arg0: i32) -> (i32, i32) {
    %c0_i32 = arith.constant 0 : i32
    %c0_i32_0 = arith.constant 0 : i32
    %c0_i32_1 = arith.constant 0 : i32
    return %c0_i32, %c0_i32_0 : i32, i32
  }
  func.func @transform_5(%arg0: i32) -> (i32, i32) {
    %c0_i32 = arith.constant 0 : i32
    %c0_i32_0 = arith.constant 0 : i32
    return %arg0, %c0_i32 : i32, i32
  }
}

</mosaic_0001>

<llo_original>
// kernel: tpu_custom_call.1
$region0: #{tpu_custom_call.1}
  #allocation0 [shape = 'u32[]', space=smem, size = 0x4, offset = 0x4, fixed_abs, tag = 'smem constant byte address 0x4 - core index']
  #allocation1 [shape = 'u32[72,128]{1,0:T(1,128)}', space=vmem, size = 0x9000, scoped, tag = 'internal scratch']
  %s0 = inlined_call_operand.hbm [shape: f32[8,512], index: 0, kind: input, shape index: {}]
  %s1 = inlined_call_operand.hbm [shape: bf16[512,256], index: 1, kind: input, shape index: {}]
  %s2 = inlined_call_operand.hbm [shape: f32[1,256], index: 2, kind: input, shape index: {}]
  %s3 = inlined_call_operand.hbm [shape: bf16[256,128], index: 3, kind: input, shape index: {}]
  %s4 = inlined_call_operand.vmem [shape: f32[1,128], index: 4, kind: input, shape index: {}]
  %s5 = inlined_call_operand.hbm [shape: f32[8,128], index: 5, kind: output, shape index: {}]
  %s6 = sld [smem:[#allocation0]]
  $region46: #{tpu_custom_call.1} parent=0
    _
  %s8 = ssub.s32 1, %s6
  %s9 = scalar_select 0, %s8, %s6
  $region1: #{tpu_custom_call.1} parent=0
    #allocation2 [shape = 'u8[16384]{0}', space=vmem, size = 0x4000, scoped, tag = 'input window, operand 0, single buffered']
    #allocation3 [shape = 's32[1]{0}', space=sflag, size = 0x4, scoped, tag = 'scoped memory for tpu_custom_call.1']
    #allocation4 [shape = 's32[1]{0}', space=sflag, size = 0x4, scoped, tag = 'scoped memory for tpu_custom_call.1']
    #allocation5 [shape = 'u8[262144]{0}', space=vmem, size = 0x40000, scoped, tag = 'input window, operand 1, single buffered']
    #allocation6 [shape = 's32[1]{0}', space=sflag, size = 0x4, scoped, tag = 'scoped memory for tpu_custom_call.1']
    #allocation7 [shape = 'u8[1024]{0}', space=vmem, size = 0x400, scoped, tag = 'input window, operand 2, single buffered']
    #allocation8 [shape = 'u8[65536]{0}', space=vmem, size = 0x10000, scoped, tag = 'input window, operand 3, single buffered']
    #allocation9 [shape = 's32[1]{0}', space=sflag, size = 0x4, scoped, tag = 'scoped memory for tpu_custom_call.1']
    #allocation10 [shape = 'u8[4096]{0}', space=vmem, size = 0x1000, scoped, tag = 'output window, operand 0, single buffered']
    %10 = vsyncpa [#allocation3], 0
    %11 = vsyncpa [#allocation6], 0
    %12 = vsyncpa [#allocation9], 0
    %13 = vsyncpa [#allocation4], 0
    // Predicated region
    $region2: #{tpu_custom_call.1} parent=1 // pred_check
      _
    $region3: #{tpu_custom_call.1} parent=1 // pred_check_branch
      %15 = sbr.rel (0) target = $region5
    $region4: #{tpu_custom_call.1} parent=1 // pred_region
      %17 = vsyncadd [#allocation3], 0
      %s19 = sshll.u32 %s0, 4
      %s20 = int_to_ptr.hbm [resolvable:$true] %s19
      %s21 = sshll.u32 [#allocation2], 4
      %s22 = int_to_ptr.vmem [resolvable:$true] %s21
      %24 = dma.hbm_to_vmem [thread:$0]  %s20, 512, %s22, [#allocation3]
    $region5: #{tpu_custom_call.1} parent=1 // pred_fallthru
      _
    // Predicated region
    $region6: #{tpu_custom_call.1} parent=1 // pred_check
      _
    $region7: #{tpu_custom_call.1} parent=1 // pred_check_branch
      %26 = sbr.rel (0) target = $region9
    $region8: #{tpu_custom_call.1} parent=1 // pred_region
      %28 = vsyncadd [#allocation6], 0
      %s29 = sshll.u32 %s1, 4
      %s30 = int_to_ptr.hbm [resolvable:$true] %s29
      %s31 = sshll.u32 [#allocation5], 4
      %s32 = int_to_ptr.vmem [resolvable:$true] %s31
      %37 = dma.hbm_to_vmem [thread:$0]  %s30, 8192, %s32, [#allocation6], 128, 128, 8
    $region9: #{tpu_custom_call.1} parent=1 // pred_fallthru
      _
    // Predicated region
    $region10: #{tpu_custom_call.1} parent=1 // pred_check
      _
    $region11: #{tpu_custom_call.1} parent=1 // pred_check_branch
      %39 = sbr.rel (0) target = $region13
    $region12: #{tpu_custom_call.1} parent=1 // pred_region
      %41 = vsyncadd [#allocation6], 0
      %s43 = sshll.u32 %s2, 4
      %s44 = int_to_ptr.hbm [resolvable:$true] %s43
      %s45 = sshll.u32 [#allocation7], 4
      %s46 = int_to_ptr.vmem [resolvable:$true] %s45
      %48 = dma.hbm_to_vmem [thread:$0]  %s44, 32, %s46, [#allocation6]
    $region13: #{tpu_custom_call.1} parent=1 // pred_fallthru
      _
    // Predicated region
    $region14: #{tpu_custom_call.1} parent=1 // pred_check
      _
    $region15: #{tpu_custom_call.1} parent=1 // pred_check_branch
      %50 = sbr.rel (0) target = $region17
    $region16: #{tpu_custom_call.1} parent=1 // pred_region
      %52 = vsyncadd [#allocation9], 0
      %s53 = sshll.u32 %s3, 4
      %s54 = int_to_ptr.hbm [resolvable:$true] %s53
      %s55 = sshll.u32 [#allocation8], 4
      %s56 = int_to_ptr.vmem [resolvable:$true] %s55
      %61 = dma.hbm_to_vmem [thread:$0]  %s54, 2048, %s56, [#allocation9], 64, 64, 4
    $region17: #{tpu_custom_call.1} parent=1 // pred_fallthru
      _
    // Predicated region
    $region18: #{tpu_custom_call.1} parent=1 // pred_check
      _
    $region19: #{tpu_custom_call.1} parent=1 // pred_check_branch
      %63 = sbr.rel (0) target = $region21
    $region20: #{tpu_custom_call.1} parent=1 // pred_region
      _
    $region21: #{tpu_custom_call.1} parent=1 // pred_fallthru
      _
    // Predicated region
    $region22: #{tpu_custom_call.1} parent=1 // pred_check
      _
    $region23: #{tpu_custom_call.1} parent=1 // pred_check_branch
      %65 = sbr.rel (0) target = $region25
    $region24: #{tpu_custom_call.1} parent=1 // pred_region
      %67 = dma.done [#allocation3], 512
    $region25: #{tpu_custom_call.1} parent=1 // pred_fallthru
      _
    // Predicated region
    $region26: #{tpu_custom_call.1} parent=1 // pred_check
      _
    $region27: #{tpu_custom_call.1} parent=1 // pred_check_branch
      %69 = sbr.rel (0) target = $region29
    $region28: #{tpu_custom_call.1} parent=1 // pred_region
      %71 = dma.done [#allocation6], 8192
    $region29: #{tpu_custom_call.1} parent=1 // pred_fallthru
      _
    // Predicated region
    $region30: #{tpu_custom_call.1} parent=1 // pred_check
      _
    $region31: #{tpu_custom_call.1} parent=1 // pred_check_branch
      %73 = sbr.rel (0) target = $region33
    $region32: #{tpu_custom_call.1} parent=1 // pred_region
      %75 = dma.done [#allocation6], 32
    $region33: #{tpu_custom_call.1} parent=1 // pred_fallthru
      _
    // Predicated region
    $region34: #{tpu_custom_call.1} parent=1 // pred_check
      _
    $region35: #{tpu_custom_call.1} parent=1 // pred_check_branch
      %77 = sbr.rel (0) target = $region37
    $region36: #{tpu_custom_call.1} parent=1 // pred_region
      %79 = dma.done [#allocation9], 2048
    $region37: #{tpu_custom_call.1} parent=1 // pred_fallthru
      _
    %v80 = vld [vmem:[#allocation2] sm:$0xff]
    %v81 = vld [vmem:[#allocation2 + $0x8] sm:$0xff]
    %v82 = vld [vmem:[#allocation2 + $0x10] sm:$0xff]
    %v83 = vld [vmem:[#allocation2 + $0x18] sm:$0xff]
    %v84 = vpack.c.bf16 %v80, %v80
    %v85 = vpack.c.bf16 %v81, %v81
    %v86 = vpack.c.bf16 %v82, %v82
    %v87 = vpack.c.bf16 %v83, %v83
    %v88 = vld [vmem:[#allocation5] sm:$0xff]
    %v89 = vld [vmem:[#allocation5 + $0x8] sm:$0xff]
    %v90 = vld [vmem:[#allocation5 + $0x10] sm:$0xff]
    %v91 = vld [vmem:[#allocation5 + $0x18] sm:$0xff]
    %v92 = vld [vmem:[#allocation5 + $0x20] sm:$0xff]
    %v93 = vld [vmem:[#allocation5 + $0x28] sm:$0xff]
    %v94 = vld [vmem:[#allocation5 + $0x30] sm:$0xff]
    %v95 = vld [vmem:[#allocation5 + $0x38] sm:$0xff]
    %v96 = vld [vmem:[#allocation5 + $0x40] sm:$0xff]
    %v97 = vld [vmem:[#allocation5 + $0x48] sm:$0xff]
    %v98 = vld [vmem:[#allocation5 + $0x50] sm:$0xff]
    %v99 = vld [vmem:[#allocation5 + $0x58] sm:$0xff]
    %v100 = vld [vmem:[#allocation5 + $0x60] sm:$0xff]
    %v101 = vld [vmem:[#allocation5 + $0x68] sm:$0xff]
    %v102 = vld [vmem:[#allocation5 + $0x70] sm:$0xff]
    %v103 = vld [vmem:[#allocation5 + $0x78] sm:$0xff]
    %v104 = vld [vmem:[#allocation5 + $0x80] sm:$0xff]
    %v105 = vld [vmem:[#allocation5 + $0x88] sm:$0xff]
    %v106 = vld [vmem:[#allocation5 + $0x90] sm:$0xff]
    %v107 = vld [vmem:[#allocation5 + $0x98] sm:$0xff]
    %v108 = vld [vmem:[#allocation5 + $0xa0] sm:$0xff]
    %v109 = vld [vmem:[#allocation5 + $0xa8] sm:$0xff]
    %v110 = vld [vmem:[#allocation5 + $0xb0] sm:$0xff]
    %v111 = vld [vmem:[#allocation5 + $0xb8] sm:$0xff]
    %v112 = vld [vmem:[#allocation5 + $0xc0] sm:$0xff]
    %v113 = vld [vmem:[#allocation5 + $0xc8] sm:$0xff]
    %v114 = vld [vmem:[#allocation5 + $0xd0] sm:$0xff]
    %v115 = vld [vmem:[#allocation5 + $0xd8] sm:$0xff]
    %v116 = vld [vmem:[#allocation5 + $0xe0] sm:$0xff]
    %v117 = vld [vmem:[#allocation5 + $0xe8] sm:$0xff]
    %v118 = vld [vmem:[#allocation5 + $0xf0] sm:$0xff]
    %v119 = vld [vmem:[#allocation5 + $0xf8] sm:$0xff]
    %v120 = vld [vmem:[#allocation5 + $0x100] sm:$0xff]
    %v121 = vld [vmem:[#allocation5 + $0x108] sm:$0xff]
    %v122 = vld [vmem:[#allocation5 + $0x110] sm:$0xff]
    %v123 = vld [vmem:[#allocation5 + $0x118] sm:$0xff]
    %v124 = vld [vmem:[#allocation5 + $0x120] sm:$0xff]
    %v125 = vld [vmem:[#allocation5 + $0x128] sm:$0xff]
    %v126 = vld [vmem:[#allocation5 + $0x130] sm:$0xff]
    %v127 = vld [vmem:[#allocation5 + $0x138] sm:$0xff]
    %v128 = vld [vmem:[#allocation5 + $0x140] sm:$0xff]
    %v129 = vld [vmem:[#allocation5 + $0x148] sm:$0xff]
    %v130 = vld [vmem:[#allocation5 + $0x150] sm:$0xff]
    %v131 = vld [vmem:[#allocation5 + $0x158] sm:$0xff]
    %v132 = vld [vmem:[#allocation5 + $0x160] sm:$0xff]
    %v133 = vld [vmem:[#allocation5 + $0x168] sm:$0xff]
    %v134 = vld [vmem:[#allocation5 + $0x170] sm:$0xff]
    %v135 = vld [vmem:[#allocation5 + $0x178] sm:$0xff]
    %v136 = vld [vmem:[#allocation5 + $0x180] sm:$0xff]
    %v137 = vld [vmem:[#allocation5 + $0x188] sm:$0xff]
    %v138 = vld [vmem:[#allocation5 + $0x190] sm:$0xff]
    %v139 = vld [vmem:[#allocation5 + $0x198] sm:$0xff]
    %v140 = vld [vmem:[#allocation5 + $0x1a0] sm:$0xff]
    %v141 = vld [vmem:[#allocation5 + $0x1a8] sm:$0xff]
    %v142 = vld [vmem:[#allocation5 + $0x1b0] sm:$0xff]
    %v143 = vld [vmem:[#allocation5 + $0x1b8] sm:$0xff]
    %v144 = vld [vmem:[#allocation5 + $0x1c0] sm:$0xff]
    %v145 = vld [vmem:[#allocation5 + $0x1c8] sm:$0xff]
    %v146 = vld [vmem:[#allocation5 + $0x1d0] sm:$0xff]
    %v147 = vld [vmem:[#allocation5 + $0x1d8] sm:$0xff]
    %v148 = vld [vmem:[#allocation5 + $0x1e0] sm:$0xff]
    %v149 = vld [vmem:[#allocation5 + $0x1e8] sm:$0xff]
    %v150 = vld [vmem:[#allocation5 + $0x1f0] sm:$0xff]
    %v151 = vld [vmem:[#allocation5 + $0x1f8] sm:$0xff]
    %v152 = vld [vmem:[#allocation7] sm:$0x3]
    %v154 = vperm.slane %v152, 0
    %v155 = vperm.slane %v152, 1
    %v222 = vunpack.c.l.b16 %v88
    %v223 = vunpack.c.h.b16 %v88
    %v224 = vunpack.c.l.b16 %v89
    %v225 = vunpack.c.h.b16 %v89
    %v226 = vunpack.c.l.b16 %v90
    %v227 = vunpack.c.h.b16 %v90
    %v228 = vunpack.c.l.b16 %v91
    %v229 = vunpack.c.h.b16 %v91
    %v230 = vunpack.c.l.b16 %v92
    %v231 = vunpack.c.h.b16 %v92
    %v232 = vunpack.c.l.b16 %v93
    %v233 = vunpack.c.h.b16 %v93
    %v234 = vunpack.c.l.b16 %v94
    %v235 = vunpack.c.h.b16 %v94
    %v236 = vunpack.c.l.b16 %v95
    %v237 = vunpack.c.h.b16 %v95
    %v238 = vunpack.c.l.b16 %v96
    %v239 = vunpack.c.h.b16 %v96
    %v240 = vunpack.c.l.b16 %v97
    %v241 = vunpack.c.h.b16 %v97
    %v242 = vunpack.c.l.b16 %v98
    %v243 = vunpack.c.h.b16 %v98
    %v244 = vunpack.c.l.b16 %v99
    %v245 = vunpack.c.h.b16 %v99
    %v246 = vunpack.c.l.b16 %v100
    %v247 = vunpack.c.h.b16 %v100
    %v248 = vunpack.c.l.b16 %v101
    %v249 = vunpack.c.h.b16 %v101
    %v250 = vunpack.c.l.b16 %v102
    %v251 = vunpack.c.h.b16 %v102
    %v252 = vunpack.c.l.b16 %v103
    %v253 = vunpack.c.h.b16 %v103
    %v254 = vunpack.c.l.b16 %v104
    %v255 = vunpack.c.h.b16 %v104
    %v256 = vunpack.c.l.b16 %v105
    %v257 = vunpack.c.h.b16 %v105
    %v258 = vunpack.c.l.b16 %v106
    %v259 = vunpack.c.h.b16 %v106
    %v260 = vunpack.c.l.b16 %v107
    %v261 = vunpack.c.h.b16 %v107
    %v262 = vunpack.c.l.b16 %v108
    %v263 = vunpack.c.h.b16 %v108
    %v264 = vunpack.c.l.b16 %v109
    %v265 = vunpack.c.h.b16 %v109
    %v266 = vunpack.c.l.b16 %v110
    %v267 = vunpack.c.h.b16 %v110
    %v268 = vunpack.c.l.b16 %v111
    %v269 = vunpack.c.h.b16 %v111
    %v270 = vunpack.c.l.b16 %v112
    %v271 = vunpack.c.h.b16 %v112
    %v272 = vunpack.c.l.b16 %v113
    %v273 = vunpack.c.h.b16 %v113
    %v274 = vunpack.c.l.b16 %v114
    %v275 = vunpack.c.h.b16 %v114
    %v276 = vunpack.c.l.b16 %v115
    %v277 = vunpack.c.h.b16 %v115
    %v278 = vunpack.c.l.b16 %v116
    %v279 = vunpack.c.h.b16 %v116
    %v280 = vunpack.c.l.b16 %v117
    %v281 = vunpack.c.h.b16 %v117
    %v282 = vunpack.c.l.b16 %v118
    %v283 = vunpack.c.h.b16 %v118
    %v284 = vunpack.c.l.b16 %v119
    %v285 = vunpack.c.h.b16 %v119
    %v286 = vunpack.c.l.b16 %v120
    %v287 = vunpack.c.h.b16 %v120
    %v288 = vunpack.c.l.b16 %v121
    %v289 = vunpack.c.h.b16 %v121
    %v290 = vunpack.c.l.b16 %v122
    %v291 = vunpack.c.h.b16 %v122
    %v292 = vunpack.c.l.b16 %v123
    %v293 = vunpack.c.h.b16 %v123
    %v294 = vunpack.c.l.b16 %v124
    %v295 = vunpack.c.h.b16 %v124
    %v296 = vunpack.c.l.b16 %v125
    %v297 = vunpack.c.h.b16 %v125
    %v298 = vunpack.c.l.b16 %v126
    %v299 = vunpack.c.h.b16 %v126
    %v300 = vunpack.c.l.b16 %v127
    %v301 = vunpack.c.h.b16 %v127
    %v302 = vunpack.c.l.b16 %v128
    %v303 = vunpack.c.h.b16 %v128
    %v304 = vunpack.c.l.b16 %v129
    %v305 = vunpack.c.h.b16 %v129
    %v306 = vunpack.c.l.b16 %v130
    %v307 = vunpack.c.h.b16 %v130
    %v308 = vunpack.c.l.b16 %v131
    %v309 = vunpack.c.h.b16 %v131
    %v310 = vunpack.c.l.b16 %v132
    %v311 = vunpack.c.h.b16 %v132
    %v312 = vunpack.c.l.b16 %v133
    %v313 = vunpack.c.h.b16 %v133
    %v314 = vunpack.c.l.b16 %v134
    %v315 = vunpack.c.h.b16 %v134
    %v316 = vunpack.c.l.b16 %v135
    %v317 = vunpack.c.h.b16 %v135
    %v318 = vunpack.c.l.b16 %v136
    %v319 = vunpack.c.h.b16 %v136
    %v320 = vunpack.c.l.b16 %v137
    %v321 = vunpack.c.h.b16 %v137
    %v322 = vunpack.c.l.b16 %v138
    %v323 = vunpack.c.h.b16 %v138
    %v324 = vunpack.c.l.b16 %v139
    %v325 = vunpack.c.h.b16 %v139
    %v326 = vunpack.c.l.b16 %v140
    %v327 = vunpack.c.h.b16 %v140
    %v328 = vunpack.c.l.b16 %v141
    %v329 = vunpack.c.h.b16 %v141
    %v330 = vunpack.c.l.b16 %v142
    %v331 = vunpack.c.h.b16 %v142
    %v332 = vunpack.c.l.b16 %v143
    %v333 = vunpack.c.h.b16 %v143
    %v334 = vunpack.c.l.b16 %v144
    %v335 = vunpack.c.h.b16 %v144
    %v336 = vunpack.c.l.b16 %v145
    %v337 = vunpack.c.h.b16 %v145
    %v338 = vunpack.c.l.b16 %v146
    %v339 = vunpack.c.h.b16 %v146
    %v340 = vunpack.c.l.b16 %v147
    %v341 = vunpack.c.h.b16 %v147
    %v342 = vunpack.c.l.b16 %v148
    %v343 = vunpack.c.h.b16 %v148
    %v344 = vunpack.c.l.b16 %v149
    %v345 = vunpack.c.h.b16 %v149
    %v346 = vunpack.c.l.b16 %v150
    %v347 = vunpack.c.h.b16 %v150
    %v348 = vunpack.c.l.b16 %v151
    %v349 = vunpack.c.h.b16 %v151
    %v350 = vpack.c.b16 %v224, %v222
    %v351 = vpack.c.b16 %v225, %v223
    %v352 = vpack.c.b16 %v228, %v226
    %v353 = vpack.c.b16 %v229, %v227
    %v354 = vpack.c.b16 %v232, %v230
    %v355 = vpack.c.b16 %v233, %v231
    %v356 = vpack.c.b16 %v236, %v234
    %v357 = vpack.c.b16 %v237, %v235
    %v358 = vpack.c.b16 %v240, %v238
    %v359 = vpack.c.b16 %v241, %v239
    %v360 = vpack.c.b16 %v244, %v242
    %v361 = vpack.c.b16 %v245, %v243
    %v362 = vpack.c.b16 %v248, %v246
    %v363 = vpack.c.b16 %v249, %v247
    %v364 = vpack.c.b16 %v252, %v250
    %v365 = vpack.c.b16 %v253, %v251
    %v366 = vpack.c.b16 %v256, %v254
    %v367 = vpack.c.b16 %v257, %v255
    %v368 = vpack.c.b16 %v260, %v258
    %v369 = vpack.c.b16 %v261, %v259
    %v370 = vpack.c.b16 %v264, %v262
    %v371 = vpack.c.b16 %v265, %v263
    %v372 = vpack.c.b16 %v268, %v266
    %v373 = vpack.c.b16 %v269, %v267
    %v374 = vpack.c.b16 %v272, %v270
    %v375 = vpack.c.b16 %v273, %v271
    %v376 = vpack.c.b16 %v276, %v274
    %v377 = vpack.c.b16 %v277, %v275
    %v378 = vpack.c.b16 %v280, %v278
    %v379 = vpack.c.b16 %v281, %v279
    %v380 = vpack.c.b16 %v284, %v282
    %v381 = vpack.c.b16 %v285, %v283
    %v382 = vpack.c.b16 %v288, %v286
    %v383 = vpack.c.b16 %v289, %v287
    %v384 = vpack.c.b16 %v292, %v290
    %v385 = vpack.c.b16 %v293, %v291
    %v386 = vpack.c.b16 %v296, %v294
    %v387 = vpack.c.b16 %v297, %v295
    %v388 = vpack.c.b16 %v300, %v298
    %v389 = vpack.c.b16 %v301, %v299
    %v390 = vpack.c.b16 %v304, %v302
    %v391 = vpack.c.b16 %v305, %v303
    %v392 = vpack.c.b16 %v308, %v306
    %v393 = vpack.c.b16 %v309, %v307
    %v394 = vpack.c.b16 %v312, %v310
    %v395 = vpack.c.b16 %v313, %v311
    %v396 = vpack.c.b16 %v316, %v314
    %v397 = vpack.c.b16 %v317, %v315
    %v398 = vpack.c.b16 %v320, %v318
    %v399 = vpack.c.b16 %v321, %v319
    %v400 = vpack.c.b16 %v324, %v322
    %v401 = vpack.c.b16 %v325, %v323
    %v402 = vpack.c.b16 %v328, %v326
    %v403 = vpack.c.b16 %v329, %v327
    %v404 = vpack.c.b16 %v332, %v330
    %v405 = vpack.c.b16 %v333, %v331
    %v406 = vpack.c.b16 %v336, %v334
    %v407 = vpack.c.b16 %v337, %v335
    %v408 = vpack.c.b16 %v340, %v338
    %v409 = vpack.c.b16 %v341, %v339
    %v410 = vpack.c.b16 %v344, %v342
    %v411 = vpack.c.b16 %v345, %v343
    %v412 = vpack.c.b16 %v348, %v346
    %v413 = vpack.c.b16 %v349, %v347
    %478 = vmatpush.bf16.msra.mxu0 %v364
    %479 = vmatpush.bf16.msra.mxu0 %v362
    %480 = vmatpush.bf16.msra.mxu0 %v360
    %481 = vmatpush.bf16.msra.mxu0 %v358
    %482 = vmatpush.bf16.msra.mxu0 %v356
    %483 = vmatpush.bf16.msra.mxu0 %v354
    %484 = vmatpush.bf16.msra.mxu0 %v352
    %485 = vmatpush.bf16.msra.mxu0 %v350
    %486 = vmatmul.bf16.gmra.mxu0 %v84
    %v487 = vpop.f32.mrf.mxu0
    %v488 = vadd.f32 %v154, %v487
    %v489 = vpop.f32.mrf.mxu0
    %490 = vdwg.mxu0
    %491 = vmatpush.bf16.msra.mxu0 %v380
    %492 = vmatpush.bf16.msra.mxu0 %v378
    %493 = vmatpush.bf16.msra.mxu0 %v376
    %494 = vmatpush.bf16.msra.mxu0 %v374
    %495 = vmatpush.bf16.msra.mxu0 %v372
    %496 = vmatpush.bf16.msra.mxu0 %v370
    %497 = vmatpush.bf16.msra.mxu0 %v368
    %498 = vmatpush.bf16.msra.mxu0 %v366
    %499 = vmatmul.bf16.gmra.mxu0 %v85
    %v500 = vpop.f32.mrf.mxu0
    %v501 = vadd.f32 %v488, %v500
    %v502 = vpop.f32.mrf.mxu0
    %503 = vdwg.mxu0
    %504 = vmatpush.bf16.msra.mxu0 %v396
    %505 = vmatpush.bf16.msra.mxu0 %v394
    %506 = vmatpush.bf16.msra.mxu0 %v392
    %507 = vmatpush.bf16.msra.mxu0 %v390
    %508 = vmatpush.bf16.msra.mxu0 %v388
    %509 = vmatpush.bf16.msra.mxu0 %v386
    %510 = vmatpush.bf16.msra.mxu0 %v384
    %511 = vmatpush.bf16.msra.mxu0 %v382
    %512 = vmatmul.bf16.gmra.mxu0 %v86
    %v513 = vpop.f32.mrf.mxu0
    %v514 = vadd.f32 %v501, %v513
    %v515 = vpop.f32.mrf.mxu0
    %516 = vdwg.mxu0
    %517 = vmatpush.bf16.msra.mxu0 %v412
    %518 = vmatpush.bf16.msra.mxu0 %v410
    %519 = vmatpush.bf16.msra.mxu0 %v408
    %520 = vmatpush.bf16.msra.mxu0 %v406
    %521 = vmatpush.bf16.msra.mxu0 %v404
    %522 = vmatpush.bf16.msra.mxu0 %v402
    %523 = vmatpush.bf16.msra.mxu0 %v400
    %524 = vmatpush.bf16.msra.mxu0 %v398
    %525 = vmatmul.bf16.gmra.mxu0 %v87
    %v526 = vpop.f32.mrf.mxu0
    %v527 = vadd.f32 %v514, %v526
    %v528 = vpop.f32.mrf.mxu0
    %529 = vdwg.mxu0
    %530 = vmatpush.bf16.msra.mxu0 %v365
    %531 = vmatpush.bf16.msra.mxu0 %v363
    %532 = vmatpush.bf16.msra.mxu0 %v361
    %533 = vmatpush.bf16.msra.mxu0 %v359
    %534 = vmatpush.bf16.msra.mxu0 %v357
    %535 = vmatpush.bf16.msra.mxu0 %v355
    %536 = vmatpush.bf16.msra.mxu0 %v353
    %537 = vmatpush.bf16.msra.mxu0 %v351
    %538 = vmatmul.bf16.gmra.mxu0 %v84
    %v539 = vpop.f32.mrf.mxu0
    %v540 = vadd.f32 %v155, %v539
    %v541 = vpop.f32.mrf.mxu0
    %542 = vdwg.mxu0
    %543 = vmatpush.bf16.msra.mxu0 %v381
    %544 = vmatpush.bf16.msra.mxu0 %v379
    %545 = vmatpush.bf16.msra.mxu0 %v377
    %546 = vmatpush.bf16.msra.mxu0 %v375
    %547 = vmatpush.bf16.msra.mxu0 %v373
    %548 = vmatpush.bf16.msra.mxu0 %v371
    %549 = vmatpush.bf16.msra.mxu0 %v369
    %550 = vmatpush.bf16.msra.mxu0 %v367
    %551 = vmatmul.bf16.gmra.mxu0 %v85
    %v552 = vpop.f32.mrf.mxu0
    %v553 = vadd.f32 %v540, %v552
    %v554 = vpop.f32.mrf.mxu0
    %555 = vdwg.mxu0
    %556 = vmatpush.bf16.msra.mxu0 %v397
    %557 = vmatpush.bf16.msra.mxu0 %v395
    %558 = vmatpush.bf16.msra.mxu0 %v393
    %559 = vmatpush.bf16.msra.mxu0 %v391
    %560 = vmatpush.bf16.msra.mxu0 %v389
    %561 = vmatpush.bf16.msra.mxu0 %v387
    %562 = vmatpush.bf16.msra.mxu0 %v385
    %563 = vmatpush.bf16.msra.mxu0 %v383
    %564 = vmatmul.bf16.gmra.mxu0 %v86
    %v565 = vpop.f32.mrf.mxu0
    %v566 = vadd.f32 %v553, %v565
    %v567 = vpop.f32.mrf.mxu0
    %568 = vdwg.mxu0
    %569 = vmatpush.bf16.msra.mxu0 %v413
    %570 = vmatpush.bf16.msra.mxu0 %v411
    %571 = vmatpush.bf16.msra.mxu0 %v409
    %572 = vmatpush.bf16.msra.mxu0 %v407
    %573 = vmatpush.bf16.msra.mxu0 %v405
    %574 = vmatpush.bf16.msra.mxu0 %v403
    %575 = vmatpush.bf16.msra.mxu0 %v401
    %576 = vmatpush.bf16.msra.mxu0 %v399
    %577 = vmatmul.bf16.gmra.mxu0 %v87
    %v578 = vpop.f32.mrf.mxu0
    %v579 = vadd.f32 %v566, %v578
    %v580 = vpop.f32.mrf.mxu0
    %581 = vdwg.mxu0
    %v582 = vmax.f32 %v527, 0.0
    %v583 = vmax.f32 %v579, 0.0
    %v584 = vpack.c.bf16 %v582, %v582
    %v585 = vpack.c.bf16 %v583, %v583
    %v586 = vld [vmem:[#allocation8] sm:$0xf]
    %v587 = vld [vmem:[#allocation8 + $0x4] sm:$0xf]
    %v588 = vld [vmem:[#allocation8 + $0x8] sm:$0xf]
    %v589 = vld [vmem:[#allocation8 + $0xc] sm:$0xf]
    %v590 = vld [vmem:[#allocation8 + $0x10] sm:$0xf]
    %v591 = vld [vmem:[#allocation8 + $0x14] sm:$0xf]
    %v592 = vld [vmem:[#allocation8 + $0x18] sm:$0xf]
    %v593 = vld [vmem:[#allocation8 + $0x1c] sm:$0xf]
    %v594 = vld [vmem:[#allocation8 + $0x20] sm:$0xf]
    %v595 = vld [vmem:[#allocation8 + $0x24] sm:$0xf]
    %v596 = vld [vmem:[#allocation8 + $0x28] sm:$0xf]
    %v597 = vld [vmem:[#allocation8 + $0x2c] sm:$0xf]
    %v598 = vld [vmem:[#allocation8 + $0x30] sm:$0xf]
    %v599 = vld [vmem:[#allocation8 + $0x34] sm:$0xf]
    %v600 = vld [vmem:[#allocation8 + $0x38] sm:$0xf]
    %v601 = vld [vmem:[#allocation8 + $0x3c] sm:$0xf]
    %v602 = vld [vmem:[#allocation8 + $0x40] sm:$0xf]
    %v603 = vld [vmem:[#allocation8 + $0x44] sm:$0xf]
    %v604 = vld [vmem:[#allocation8 + $0x48] sm:$0xf]
    %v605 = vld [vmem:[#allocation8 + $0x4c] sm:$0xf]
    %v606 = vld [vmem:[#allocation8 + $0x50] sm:$0xf]
    %v607 = vld [vmem:[#allocation8 + $0x54] sm:$0xf]
    %v608 = vld [vmem:[#allocation8 + $0x58] sm:$0xf]
    %v609 = vld [vmem:[#allocation8 + $0x5c] sm:$0xf]
    %v610 = vld [vmem:[#allocation8 + $0x60] sm:$0xf]
    %v611 = vld [vmem:[#allocation8 + $0x64] sm:$0xf]
    %v612 = vld [vmem:[#allocation8 + $0x68] sm:$0xf]
    %v613 = vld [vmem:[#allocation8 + $0x6c] sm:$0xf]
    %v614 = vld [vmem:[#allocation8 + $0x70] sm:$0xf]
    %v615 = vld [vmem:[#allocation8 + $0x74] sm:$0xf]
    %v616 = vld [vmem:[#allocation8 + $0x78] sm:$0xf]
    %v617 = vld [vmem:[#allocation8 + $0x7c] sm:$0xf]
    %v618 = vld [vmem:[%s4] sm:$0x1]
    %v620 = vperm.slane %v618, 0
    %v654 = vunpack.c.l.b16 %v586
    %v655 = vunpack.c.l.b16 %v587
    %v656 = vunpack.c.l.b16 %v588
    %v657 = vunpack.c.l.b16 %v589
    %v658 = vunpack.c.l.b16 %v590
    %v659 = vunpack.c.l.b16 %v591
    %v660 = vunpack.c.l.b16 %v592
    %v661 = vunpack.c.l.b16 %v593
    %v662 = vunpack.c.l.b16 %v594
    %v663 = vunpack.c.l.b16 %v595
    %v664 = vunpack.c.l.b16 %v596
    %v665 = vunpack.c.l.b16 %v597
    %v666 = vunpack.c.l.b16 %v598
    %v667 = vunpack.c.l.b16 %v599
    %v668 = vunpack.c.l.b16 %v600
    %v669 = vunpack.c.l.b16 %v601
    %v670 = vunpack.c.l.b16 %v602
    %v671 = vunpack.c.l.b16 %v603
    %v672 = vunpack.c.l.b16 %v604
    %v673 = vunpack.c.l.b16 %v605
    %v674 = vunpack.c.l.b16 %v606
    %v675 = vunpack.c.l.b16 %v607
    %v676 = vunpack.c.l.b16 %v608
    %v677 = vunpack.c.l.b16 %v609
    %v678 = vunpack.c.l.b16 %v610
    %v679 = vunpack.c.l.b16 %v611
    %v680 = vunpack.c.l.b16 %v612
    %v681 = vunpack.c.l.b16 %v613
    %v682 = vunpack.c.l.b16 %v614
    %v683 = vunpack.c.l.b16 %v615
    %v684 = vunpack.c.l.b16 %v616
    %v685 = vunpack.c.l.b16 %v617
    %v686 = vpack.c.b16 %v655, %v654
    %v687 = vpack.c.b16 %v657, %v656
    %v688 = vpack.c.b16 %v659, %v658
    %v689 = vpack.c.b16 %v661, %v660
    %v690 = vpack.c.b16 %v663, %v662
    %v691 = vpack.c.b16 %v665, %v664
    %v692 = vpack.c.b16 %v667, %v666
    %v693 = vpack.c.b16 %v669, %v668
    %v694 = vpack.c.b16 %v671, %v670
    %v695 = vpack.c.b16 %v673, %v672
    %v696 = vpack.c.b16 %v675, %v674
    %v697 = vpack.c.b16 %v677, %v676
    %v698 = vpack.c.b16 %v679, %v678
    %v699 = vpack.c.b16 %v681, %v680
    %v700 = vpack.c.b16 %v683, %v682
    %v701 = vpack.c.b16 %v685, %v684
    %718 = vmatpush.bf16.msra.mxu0 %v693
    %719 = vmatpush.bf16.msra.mxu0 %v692
    %720 = vmatpush.bf16.msra.mxu0 %v691
    %721 = vmatpush.bf16.msra.mxu0 %v690
    %722 = vmatpush.bf16.msra.mxu0 %v689
    %723 = vmatpush.bf16.msra.mxu0 %v688
    %724 = vmatpush.bf16.msra.mxu0 %v687
    %725 = vmatpush.bf16.msra.mxu0 %v686
    %726 = vmatmul.bf16.gmra.mxu0 %v584
    %v727 = vpop.f32.mrf.mxu0
    %v728 = vadd.f32 %v620, %v727
    %v729 = vpop.f32.mrf.mxu0
    %730 = vdwg.mxu0
    %731 = vmatpush.bf16.msra.mxu0 %v701
    %732 = vmatpush.bf16.msra.mxu0 %v700
    %733 = vmatpush.bf16.msra.mxu0 %v699
    %734 = vmatpush.bf16.msra.mxu0 %v698
    %735 = vmatpush.bf16.msra.mxu0 %v697
    %736 = vmatpush.bf16.msra.mxu0 %v696
    %737 = vmatpush.bf16.msra.mxu0 %v695
    %738 = vmatpush.bf16.msra.mxu0 %v694
    %739 = vmatmul.bf16.gmra.mxu0 %v585
    %v740 = vpop.f32.mrf.mxu0
    %v741 = vadd.f32 %v728, %v740
    %v742 = vpop.f32.mrf.mxu0
    %743 = vdwg.mxu0
    %744 = vst [vmem:[#allocation10] sm:$0xff] %v741
    // Predicated region
    $region38: #{tpu_custom_call.1} parent=1 // pred_check
      _
    $region39: #{tpu_custom_call.1} parent=1 // pred_check_branch
      %746 = sbr.rel (0) target = $region41
    $region40: #{tpu_custom_call.1} parent=1 // pred_region
      %748 = vsyncadd [#allocation4], 0
      %s750 = sshll.u32 [#allocation10], 4
      %s751 = int_to_ptr.vmem [resolvable:$true] %s750
      %s752 = sshll.u32 %s5, 4
      %s753 = int_to_ptr.hbm [resolvable:$true] %s752
      %755 = dma.vmem_to_hbm [thread:$0]  %s751, 128, %s753, [#allocation4]
    $region41: #{tpu_custom_call.1} parent=1 // pred_fallthru
      _
    // Predicated region
    $region42: #{tpu_custom_call.1} parent=1 // pred_check
      _
    $region43: #{tpu_custom_call.1} parent=1 // pred_check_branch
      %757 = sbr.rel (0) target = $region45
    $region44: #{tpu_custom_call.1} parent=1 // pred_region
      %759 = dma.done [#allocation4], 128
    $region45: #{tpu_custom_call.1} parent=1 // pred_fallthru
      _
    %760 = vsyncpa [#allocation3], 1
    %761 = vsyncpa [#allocation6], 1
    %762 = vsyncpa [#allocation9], 1
    %763 = vsyncpa [#allocation4], 1

</llo_original>
